<compile_context>
chip_gen: v6e
topology: v6e:2x2x1
jax: 0.10.0
libtpu: 0.0.40
codegen_flags: <defaults>
</compile_context>

<pallas_src>
import functools

import jax
import jax.numpy as jnp
from jax.experimental import pallas as pl
from jax.experimental.pallas import tpu as pltpu


def _round_up(x, m):
    return ((x + m - 1) // m) * m


# ---------------------------------------------------------------------------
# Per-generation VMEM budgeting
# ---------------------------------------------------------------------------

@functools.lru_cache(maxsize=None)
def _vmem_limits():
    """(compiler scoped-VMEM limit, our tiling budget) in bytes."""
    cap = 64 * 1024 * 1024          # safe fallback (v7x per-TC) if query fails
    try:
        info = pltpu.get_tpu_info()
        c = getattr(info, "vmem_capacity_bytes", None)
        if c:
            cap = int(c)
    except Exception:
        pass
    # v5e/v6e (128 MiB) -> 96 MiB limit; v7x (64 MiB/TC) -> 48 MiB limit.
    limit = min((cap * 3) // 4, 100 * 1024 * 1024)
    budget = (limit * 17) // 20     # leave headroom for compiler scratch/sems
    return limit, budget


_TM_CANDIDATES = (2048, 1024, 512, 256, 128, 64, 32, 16)


def _choose_tm_layers(n_tokens, d_feat):
    """Largest 16-aligned token tile for the fused-layers kernel."""
    _, budget = _vmem_limits()
    # Per-layer weight blocks (bf16, double-buffered across the depth axis)
    # plus f32 biases (double-buffered).
    weight_bytes = 2 * 2 * (2 * d_feat * d_feat) + 2 * 4 * (2 * d_feat)
    tm = 16
    for cand in _TM_CANDIDATES:
        x_buf = 2 * 2 * cand * d_feat     # bf16 input tile, double-buffered
        o_buf = 2 * 2 * cand * d_feat     # bf16 output tile, double-buffered
        act = 4 * cand * d_feat           # f32 activation scratch (single)
        if weight_bytes + x_buf + o_buf + act <= budget:
            tm = cand
            break
    tm = min(tm, _round_up(max(n_tokens, 1), 16))
    # Megacore (v7x): make sure the single "parallel" M axis has >= 2 tiles.
    if n_tokens > 16:
        while tm > 16 and pl.cdiv(n_tokens, tm) < 2:
            tm = max(16, _round_up(tm // 2, 16))
    return tm


def _choose_proj_tiles(n_tokens, d_in_p, vocab_p):
    """(tm, tn) for the vocab projection; its output tile is (tm, tn) f32."""
    _, budget = _vmem_limits()
    tn = 128
    for cand in (1024, 512, 256, 128):    # wide, 256-multiple N feeds the MXU
        if vocab_p % cand == 0:
            tn = cand
            break
    tm = 16
    for cand in _TM_CANDIDATES:
        x_buf = 2 * 2 * cand * d_in_p     # bf16 input tile, double-buffered
        w_buf = 2 * 2 * d_in_p * tn       # bf16 weight tile, double-buffered
        b_buf = 2 * 4 * tn                # f32 bias tile, double-buffered
        o_buf = 2 * 4 * cand * tn         # f32 logits tile, double-buffered
        if x_buf + w_buf + b_buf + o_buf <= budget:
            tm = cand
            break
    tm = min(tm, _round_up(max(n_tokens, 1), 16))
    # Only force >= 2 M tiles when the N axis alone can't feed both v7x cores.
    if n_tokens > 16 and (vocab_p // tn) < 2:
        while tm > 16 and pl.cdiv(n_tokens, tm) < 2:
            tm = max(16, _round_up(tm // 2, 16))
    return tm, tn


# ---------------------------------------------------------------------------
# Kernels
# ---------------------------------------------------------------------------

def fused_layers_kernel(x_ref, w1_ref, b1_ref, w2_ref, b2_ref, o_ref, act_ref):
    """Grid = (M tiles, depth).  One token tile runs every layer sequentially;
    the activation stays resident in an f32 VMEM scratch across the depth axis.
    Per layer: act = relu(act @ W1 + b1) @ W2 + b2 (bf16 MXU, f32 accumulate)."""
    layer = pl.program_id(1)

    @pl.when(layer == 0)
    def _():
        act_ref[...] = x_ref[...].astype(jnp.float32)

    # ReLU intermediate is a value (no VMEM round-trip); cast to bf16 and feed
    # straight into the second MXU pass.
    h = jnp.maximum(
        jnp.dot(act_ref[...].astype(jnp.bfloat16), w1_ref[0],
                preferred_element_type=jnp.float32) + b1_ref[0], 0.0)
    act_ref[...] = jnp.dot(h.astype(jnp.bfloat16), w2_ref[0],
                           preferred_element_type=jnp.float32) + b2_ref[0]

    @pl.when(layer == pl.num_programs(1) - 1)
    def _():
        o_ref[...] = act_ref[...].astype(o_ref.dtype)


def linear_kernel(x_ref, w_ref, b_ref, o_ref):
    """One (tm, tn) output tile of: out = x @ W + b."""
    out = jnp.dot(x_ref[...], w_ref[...],
                  preferred_element_type=jnp.float32) + b_ref[...]
    o_ref[...] = out.astype(o_ref.dtype)


# ---------------------------------------------------------------------------
# Wrappers
# ---------------------------------------------------------------------------

def fused_state_space_layers(x_p, w1_s, b1_s, w2_s, b2_s, tm):
    """x_p: (M_pad, d_feat) bf16; stacked weights (depth, d_feat, d_feat) bf16,
    biases (depth, 1, d_feat) f32.  Returns (M_pad, d_feat) bf16."""
    vmem_limit, _ = _vmem_limits()
    m_pad, d_feat = x_p.shape
    depth = w1_s.shape[0]
    return pl.pallas_call(
        fused_layers_kernel,
        out_shape=jax.ShapeDtypeStruct((m_pad, d_feat), jnp.bfloat16),
        grid_spec=pltpu.PrefetchScalarGridSpec(
            num_scalar_prefetch=0,
            grid=(m_pad // tm, depth),
            in_specs=[
                pl.BlockSpec((tm, d_feat), lambda i, l: (i, 0)),          # x
                pl.BlockSpec((1, d_feat, d_feat), lambda i, l: (l, 0, 0)),  # W1[l]
                pl.BlockSpec((1, 1, d_feat), lambda i, l: (l, 0, 0)),       # b1[l]
                pl.BlockSpec((1, d_feat, d_feat), lambda i, l: (l, 0, 0)),  # W2[l]
                pl.BlockSpec((1, 1, d_feat), lambda i, l: (l, 0, 0)),       # b2[l]
            ],
            out_specs=pl.BlockSpec((tm, d_feat), lambda i, l: (i, 0)),
            scratch_shapes=[pltpu.VMEM((tm, d_feat), jnp.float32)],
        ),
        compiler_params=pltpu.CompilerParams(
            dimension_semantics=("parallel", "arbitrary"),
            vmem_limit_bytes=vmem_limit),
    )(x_p, w1_s, b1_s, w2_s, b2_s)


def vocab_projection(x_p, w_p, b_p, tm, tn):
    """x_p: (M_pad, d_in_p) bf16, w_p: (d_in_p, vocab_p) bf16 -> f32 logits."""
    vmem_limit, _ = _vmem_limits()
    m_pad, d_in_p = x_p.shape
    vocab_p = w_p.shape[1]
    return pl.pallas_call(
        linear_kernel,
        out_shape=jax.ShapeDtypeStruct((m_pad, vocab_p), jnp.float32),
        grid_spec=pltpu.PrefetchScalarGridSpec(
            num_scalar_prefetch=0,
            grid=(m_pad // tm, vocab_p // tn),
            in_specs=[
                pl.BlockSpec((tm, d_in_p), lambda i, j: (i, 0)),
                pl.BlockSpec((d_in_p, tn), lambda i, j: (0, j)),
                pl.BlockSpec((1, tn), lambda i, j: (0, j)),
            ],
            out_specs=pl.BlockSpec((tm, tn), lambda i, j: (i, j)),
        ),
        compiler_params=pltpu.CompilerParams(
            dimension_semantics=("parallel", "parallel"),
            vmem_limit_bytes=vmem_limit),
    )(x_p, w_p, b_p)


def prepare_params(embed, layers, fc_out):
    """One-time parameter prep: pad every feature dim to a lane-dense multiple
    of 128, cast MXU operands to bf16, stack the depth layers."""
    dim = embed.shape[1]
    state_dim = layers[0][0].shape[1]
    for (w1, b1, w2, b2) in layers:
        # Guard against silent mis-padding if layer shapes ever diverge.
        assert w1.shape[1] == state_dim and w2.shape == (state_dim, state_dim), (
            "every StateSpaceLayer must map to state_dim")
        assert b1.shape == (state_dim,) and b2.shape == (state_dim,)
    w_out, b_out = fc_out
    assert w_out.shape[0] == state_dim
    vocab = w_out.shape[1]

    d_feat = _round_up(max(dim, state_dim), 128)
    vocab_p = _round_up(vocab, 128)

    def pad2(a, rows, cols):
        return jnp.pad(a, ((0, rows - a.shape[0]), (0, cols - a.shape[1])))

    # Embedding table pre-padded/cast so the row gather yields bf16 (M, d_feat).
    embed_p = pad2(embed, embed.shape[0], d_feat).astype(jnp.bfloat16)

    w1_s = jnp.stack([pad2(w1, d_feat, d_feat) for (w1, _, _, _) in layers]
                     ).astype(jnp.bfloat16)
    w2_s = jnp.stack([pad2(w2, d_feat, d_feat) for (_, _, w2, _) in layers]
                     ).astype(jnp.bfloat16)
    b1_s = jnp.stack([jnp.pad(b1, (0, d_feat - b1.shape[0])).reshape(1, d_feat)
                      for (_, b1, _, _) in layers]).astype(jnp.float32)
    b2_s = jnp.stack([jnp.pad(b2, (0, d_feat - b2.shape[0])).reshape(1, d_feat)
                      for (_, _, _, b2) in layers]).astype(jnp.float32)

    w_out_p = pad2(w_out, d_feat, vocab_p).astype(jnp.bfloat16)
    b_out_p = jnp.pad(b_out, (0, vocab_p - vocab)).reshape(1, vocab_p
                      ).astype(jnp.float32)

    return {"embed": embed_p, "w1": w1_s, "b1": b1_s, "w2": w2_s, "b2": b2_s,
            "w_out": w_out_p, "b_out": b_out_p, "vocab": vocab}


def ssm_forward(tokens, pp):
    """Full SSM forward on prepared params: embed -> fused layers -> logits."""
    lead_shape = tokens.shape
    vocab = pp["vocab"]
    vocab_p = pp["w_out"].shape[1]
    d_feat = pp["embed"].shape[1]

    # TODO(synk): the nn.Embedding lookup is a data-dependent row gather; it is
    # performed with jnp.take in the wrapper rather than inside a Pallas kernel.
    x = jnp.take(pp["embed"], tokens.reshape(-1), axis=0)   # (M, d_feat) bf16
    m = x.shape[0]

    # Fused depth stack: one pallas_call over (M tiles, depth).
    tm = _choose_tm_layers(m, d_feat)
    m_pad = pl.cdiv(m, tm) * tm
    x = jnp.pad(x, ((0, m_pad - m), (0, 0)))
    h = fused_state_space_layers(x, pp["w1"], pp["b1"], pp["w2"], pp["b2"], tm)

    # Vocab projection with its own token tile (its output tile is only tm x tn).
    tm_p, tn = _choose_proj_tiles(m, d_feat, vocab_p)
    m_pad_p = pl.cdiv(m, tm_p) * tm_p
    if m_pad_p > h.shape[0]:
        h = jnp.pad(h, ((0, m_pad_p - h.shape[0]), (0, 0)))
    elif m_pad_p < h.shape[0]:
        h = h[:m_pad_p]
    logits_p = vocab_projection(h, pp["w_out"], pp["b_out"], tm_p, tn)

    return logits_p[:m, :vocab].reshape(*lead_shape, vocab)


def reference_ssm(tokens, params):
    x = jnp.take(params["embed"], tokens.reshape(-1), axis=0)
    h = x
    for (w1, b1, w2, b2) in params["layers"]:
        h = jnp.maximum(h @ w1 + b1, 0.0) @ w2 + b2
    w_out, b_out = params["fc_out"]
    logits = h @ w_out + b_out
    return logits.reshape(*tokens.shape, -1)


if __name__ == "__main__":
    vocab_size, dim, state_dim, depth = 100, 32, 32, 2
    batch, seq = 2, 8

    key = jax.random.PRNGKey(0)
    keys = iter(jax.random.split(key, 4 + 4 * depth))

    def bf16_exact(a):
        # Store parameters at bf16-representable values (the kernel's MXU dtype).
        return a.astype(jnp.bfloat16).astype(jnp.float32)

    tokens = jax.random.randint(next(keys), (batch, seq), 0, vocab_size,
                                dtype=jnp.int32)
    embed = bf16_exact(jax.random.normal(next(keys), (vocab_size, dim),
                                         jnp.float32))

    layers = []
    in_d = dim
    for _ in range(depth):
        w1 = bf16_exact(jax.random.normal(next(keys), (in_d, state_dim),
                                          jnp.float32) / jnp.sqrt(in_d))
        b1 = jax.random.normal(next(keys), (state_dim,), jnp.float32) * 0.01
        w2 = bf16_exact(jax.random.normal(next(keys), (state_dim, state_dim),
                                          jnp.float32) / jnp.sqrt(state_dim))
        b2 = jax.random.normal(next(keys), (state_dim,), jnp.float32) * 0.01
        layers.append((w1, b1, w2, b2))
        in_d = state_dim

    w_out = bf16_exact(jax.random.normal(next(keys), (state_dim, vocab_size),
                                         jnp.float32) / jnp.sqrt(state_dim))
    b_out = jax.random.normal(next(keys), (vocab_size,), jnp.float32) * 0.01

    raw_params = {"embed": embed, "layers": layers, "fc_out": (w_out, b_out)}
    prepared = prepare_params(embed, layers, (w_out, b_out))  # one-time prep

    logits = ssm_forward(tokens, prepared)
    logits = jax.block_until_ready(logits)

    ref = reference_ssm(tokens, raw_params)
    assert logits.shape == (batch, seq, vocab_size)
    max_diff = jnp.max(jnp.abs(logits - ref))
    assert jnp.allclose(logits, ref, atol=3e-2, rtol=3e-2), (
        f"mismatch vs reference, max abs diff = {max_diff}")

    print("KERNEL_OK")
</pallas_src>

<mosaic_0001>
module attributes {stable_mosaic.version = 11 : i64} {
  func.func @fused_layers_kernel(%arg0: i32, %arg1: i32, %arg2: memref<16x128xbf16, #tpu.memory_space<vmem>>, %arg3: memref<1x128x128xbf16, #tpu.memory_space<vmem>>, %arg4: memref<1x1x128xf32, #tpu.memory_space<vmem>>, %arg5: memref<1x128x128xbf16, #tpu.memory_space<vmem>>, %arg6: memref<1x1x128xf32, #tpu.memory_space<vmem>>, %arg7: memref<16x128xbf16, #tpu.memory_space<vmem>>, %arg8: memref<16x128xf32, #tpu.memory_space<vmem>>) attributes {dimension_semantics = [#tpu.dimension_semantics<parallel>, #tpu.dimension_semantics<arbitrary>], iteration_bounds = array<i64: 1, 2>, scalar_prefetch = 0 : i64, scratch_operands = 1 : i64, tpu.core_type = #tpu.core_type<tc>, window_params = [{transform_indices = @transform_0, window_bounds = array<i64: 16, 128>}, {transform_indices = @transform_1, window_bounds = array<i64: 1, 128, 128>}, {transform_indices = @transform_2, window_bounds = array<i64: 1, 1, 128>}, {transform_indices = @transform_3, window_bounds = array<i64: 1, 128, 128>}, {transform_indices = @transform_4, window_bounds = array<i64: 1, 1, 128>}, {transform_indices = @transform_5, window_bounds = array<i64: 16, 128>}]} {
    %c0_i32 = arith.constant 0 : i32
    %0 = arith.cmpi eq, %arg1, %c0_i32 : i32
    %1 = arith.extui %0 : i1 to i32
    %c0_i32_0 = arith.constant 0 : i32
    %2 = arith.cmpi ne, %1, %c0_i32_0 : i32
    scf.if %2 {
      %c0_19 = arith.constant 0 : index
      %c0_20 = arith.constant 0 : index
      %26 = vector.load %arg2[%c0_19, %c0_20] : memref<16x128xbf16, #tpu.memory_space<vmem>>, vector<16x128xbf16>
      %27 = arith.extf %26 : vector<16x128xbf16> to vector<16x128xf32>
      %c0_21 = arith.constant 0 : index
      %c0_22 = arith.constant 0 : index
      %28 = vector.load %arg8[%c0_21, %c0_22] : memref<16x128xf32, #tpu.memory_space<vmem>>, vector<16x128xf32>
      tpu.vector_store %arg8[%c0_21, %c0_22], %27 {strides = array<i32>} : memref<16x128xf32, #tpu.memory_space<vmem>>, vector<16x128xf32>,
    } else {
    }
    %c0 = arith.constant 0 : index
    %c0_1 = arith.constant 0 : index
    %3 = vector.load %arg8[%c0, %c0_1] : memref<16x128xf32, #tpu.memory_space<vmem>>, vector<16x128xf32>
    %4 = arith.truncf %3 : vector<16x128xf32> to vector<16x128xbf16>
    %c0_2 = arith.constant 0 : index
    %c0_3 = arith.constant 0 : index
    %c0_4 = arith.constant 0 : index
    %5 = vector.load %arg3[%c0_2, %c0_3, %c0_4] : memref<1x128x128xbf16, #tpu.memory_space<vmem>>, vector<1x128x128xbf16>
    %6 = vector.shape_cast %5 : vector<1x128x128xbf16> to vector<128x128xbf16>
    %cst = arith.constant dense<0.000000e+00> : vector<16x128xf32>
    %7 = tpu.matmul %4, %6, %cst {dimension_numbers = #tpu.dot_dimension_numbers<[1], [0], [0], [1], [0, 0, 1, 1], [], []>} : vector<16x128xbf16>, vector<128x128xbf16>, vector<16x128xf32> -> vector<16x128xf32>
    %c0_5 = arith.constant 0 : index
    %c0_6 = arith.constant 0 : index
    %c0_7 = arith.constant 0 : index
    %8 = vector.load %arg4[%c0_5, %c0_6, %c0_7] : memref<1x1x128xf32, #tpu.memory_space<vmem>>, vector<1x1x128xf32>
    %9 = vector.shape_cast %8 : vector<1x1x128xf32> to vector<1x128xf32>
    %10 = vector.broadcast %9 : vector<1x128xf32> to vector<16x128xf32>
    %11 = arith.addf %7, %10 : vector<16x128xf32>
    %cst_8 = arith.constant 0.000000e+00 : f32
    %12 = vector.broadcast %cst_8 : f32 to vector<16x128xf32>
    %13 = arith.maximumf %11, %12 : vector<16x128xf32>
    %14 = arith.truncf %13 : vector<16x128xf32> to vector<16x128xbf16>
    %c0_9 = arith.constant 0 : index
    %c0_10 = arith.constant 0 : index
    %c0_11 = arith.constant 0 : index
    %15 = vector.load %arg5[%c0_9, %c0_10, %c0_11] : memref<1x128x128xbf16, #tpu.memory_space<vmem>>, vector<1x128x128xbf16>
    %16 = vector.shape_cast %15 : vector<1x128x128xbf16> to vector<128x128xbf16>
    %cst_12 = arith.constant dense<0.000000e+00> : vector<16x128xf32>
    %17 = tpu.matmul %14, %16, %cst_12 {dimension_numbers = #tpu.dot_dimension_numbers<[1], [0], [0], [1], [0, 0, 1, 1], [], []>} : vector<16x128xbf16>, vector<128x128xbf16>, vector<16x128xf32> -> vector<16x128xf32>
    %c0_13 = arith.constant 0 : index
    %c0_14 = arith.constant 0 : index
    %c0_15 = arith.constant 0 : index
    %18 = vector.load %arg6[%c0_13, %c0_14, %c0_15] : memref<1x1x128xf32, #tpu.memory_space<vmem>>, vector<1x1x128xf32>
    %19 = vector.shape_cast %18 : vector<1x1x128xf32> to vector<1x128xf32>
    %20 = vector.broadcast %19 : vector<1x128xf32> to vector<16x128xf32>
    %21 = arith.addf %17, %20 : vector<16x128xf32>
    %c0_16 = arith.constant 0 : index
    %c0_17 = arith.constant 0 : index
    %22 = vector.load %arg8[%c0_16, %c0_17] : memref<16x128xf32, #tpu.memory_space<vmem>>, vector<16x128xf32>
    tpu.vector_store %arg8[%c0_16, %c0_17], %21 {strides = array<i32>} : memref<16x128xf32, #tpu.memory_space<vmem>>, vector<16x128xf32>,
    %c1_i32 = arith.constant 1 : i32
    %23 = arith.cmpi eq, %arg1, %c1_i32 : i32
    %24 = arith.extui %23 : i1 to i32
    %c0_i32_18 = arith.constant 0 : i32
    %25 = arith.cmpi ne, %24, %c0_i32_18 : i32
    scf.if %25 {
      %c0_19 = arith.constant 0 : index
      %c0_20 = arith.constant 0 : index
      %26 = vector.load %arg8[%c0_19, %c0_20] : memref<16x128xf32, #tpu.memory_space<vmem>>, vector<16x128xf32>
      %27 = arith.truncf %26 : vector<16x128xf32> to vector<16x128xbf16>
      %c0_21 = arith.constant 0 : index
      %c0_22 = arith.constant 0 : index
      %28 = vector.load %arg7[%c0_21, %c0_22] : memref<16x128xbf16, #tpu.memory_space<vmem>>, vector<16x128xbf16>
      tpu.vector_store %arg7[%c0_21, %c0_22], %27 {strides = array<i32>} : memref<16x128xbf16, #tpu.memory_space<vmem>>, vector<16x128xbf16>,
    } else {
    }
    return
  }
  func.func @transform_0(%arg0: i32, %arg1: i32) -> (i32, i32) {
    %c0_i32 = arith.constant 0 : i32
    %c0_i32_0 = arith.constant 0 : i32
    return %arg0, %c0_i32 : i32, i32
  }
  func.func @transform_1(%arg0: i32, %arg1: i32) -> (i32, i32, i32) {
    %c0_i32 = arith.constant 0 : i32
    %c0_i32_0 = arith.constant 0 : i32
    %c0_i32_1 = arith.constant 0 : i32
    return %arg1, %c0_i32, %c0_i32_0 : i32, i32, i32
  }
  func.func @transform_2(%arg0: i32, %arg1: i32) -> (i32, i32, i32) {
    %c0_i32 = arith.constant 0 : i32
    %c0_i32_0 = arith.constant 0 : i32
    %c0_i32_1 = arith.constant 0 : i32
    return %arg1, %c0_i32, %c0_i32_0 : i32, i32, i32
  }
  func.func @transform_3(%arg0: i32, %arg1: i32) -> (i32, i32, i32) {
    %c0_i32 = arith.constant 0 : i32
    %c0_i32_0 = arith.constant 0 : i32
    %c0_i32_1 = arith.constant 0 : i32
    return %arg1, %c0_i32, %c0_i32_0 : i32, i32, i32
  }
  func.func @transform_4(%arg0: i32, %arg1: i32) -> (i32, i32, i32) {
    %c0_i32 = arith.constant 0 : i32
    %c0_i32_0 = arith.constant 0 : i32
    %c0_i32_1 = arith.constant 0 : i32
    return %arg1, %c0_i32, %c0_i32_0 : i32, i32, i32
  }
  func.func @transform_5(%arg0: i32, %arg1: i32) -> (i32, i32) {
    %c0_i32 = arith.constant 0 : i32
    %c0_i32_0 = arith.constant 0 : i32
    return %arg0, %c0_i32 : i32, i32
  }
}

</mosaic_0001>

<llo_original>
// kernel: tpu_custom_call.1
$region0: #{tpu_custom_call.1}
  #allocation0 [shape = 'u32[]', space=smem, size = 0x4, offset = 0x4, fixed_abs, tag = 'smem constant byte address 0x4 - core index']
  #allocation1 [shape = 'u32[144,128]{1,0:T(1,128)}', space=vmem, size = 0x12000, scoped, tag = 'internal scratch']
  #allocation2 [shape = 'f32[16,128]{1,0:T(8,128)}', space=vmem, size = 0x2000, scoped, tag = 'scratch operand']
  %s0 = inlined_call_operand.hbm [shape: bf16[16,128], index: 0, kind: input, shape index: {}]
  %s1 = inlined_call_operand.hbm [shape: bf16[2,128,128], index: 1, kind: input, shape index: {}]
  %s2 = inlined_call_operand.vmem [shape: f32[2,1,128], index: 2, kind: input, shape index: {}]
  %s3 = inlined_call_operand.hbm [shape: bf16[2,128,128], index: 3, kind: input, shape index: {}]
  %s4 = inlined_call_operand.vmem [shape: f32[2,1,128], index: 4, kind: input, shape index: {}]
  %s5 = inlined_call_operand.hbm [shape: bf16[16,128], index: 5, kind: output, shape index: {}]
  %s6 = sld [smem:[#allocation0]]
  $region73: #{tpu_custom_call.1} parent=0
    _
  %s8 = ssub.s32 1, %s6
  %s9 = scalar_select 0, %s8, %s6
  $region1: #{tpu_custom_call.1} parent=0
    #allocation3 [shape = 'u8[4096]{0}', space=vmem, size = 0x1000, scoped, tag = 'input window, operand 0, single buffered']
    #allocation4 [shape = 's32[2]{0}', space=sflag, size = 0x8, scoped, tag = 'scoped memory for tpu_custom_call.1']
    #allocation5 [shape = 's32[2]{0}', space=sflag, size = 0x8, scoped, tag = 'scoped memory for tpu_custom_call.1']
    #allocation6 [shape = 'u8[65536]{0}', space=vmem, size = 0x10000, scoped, tag = 'input window, operand 1']
    #allocation7 [shape = 's32[2]{0}', space=sflag, size = 0x8, scoped, tag = 'scoped memory for tpu_custom_call.1']
    #allocation8 [shape = 'u8[65536]{0}', space=vmem, size = 0x10000, scoped, tag = 'input window, operand 3']
    #allocation9 [shape = 'u8[4096]{0}', space=vmem, size = 0x1000, scoped, tag = 'output window, operand 0, single buffered']
    %10 = vsyncpa [#allocation4], 0
    %11 = vsyncpa [#allocation7], 0
    %s12 = scalar_lea.sflag [#allocation7], 1
    %13 = vsyncpa %s12, 0
    %14 = vsyncpa [#allocation5], 0
    loop: start=0, step=1, limit=4
    $region2: #{tpu_custom_call.1} parent=1 // loop_pre_header
      _
    $region3: #{tpu_custom_call.1} parent=1 // loop_header
      %s16 = sphi 0, %s20
      %p17 = scmp.ge.s32.totalorder %s16, 4
      %s23 = sphi 0, %s35
      %s24 = sphi 0, %s31
      %s25 = sphi 0, %s23
      %s26 = sphi 0, %s24
      %s27 = sphi 0, %s25
      %s28 = sphi 0, %s26
      %s38 = sphi 0, %s40
      %s41 = sphi 0, %s38
      %s42 = sphi 0, %s41
      %s58 = sphi 0, %s42
      %s64 = sphi 0, %s66
      %s67 = sphi 0, %s64
      %s68 = sphi 0, %s67
      %s84 = sphi 0, %s68
      %s90 = sphi 0, %s92
      %s93 = sphi 0, %s90
      %s94 = sphi 0, %s93
      %s110 = sphi 0, %s94
      %s116 = sphi 0, %s118
      %s119 = sphi 0, %s116
      %s120 = sphi 0, %s119
      %s136 = sphi 0, %s120
      %s142 = sphi 0, %s144
      %s145 = sphi 0, %s142
      %s146 = sphi 0, %s145
      %s162 = sphi 0, %s146
      %s168 = sphi 0, %s170
      %s171 = sphi 0, %s168
      %s172 = sphi 0, %s171
      %s188 = sphi 0, %s172
    $region4: #{tpu_custom_call.1} parent=1 // loop_header_branch
      %19 = sbr.rel (%p17) target = $region8
    $region5: #{tpu_custom_call.1} parent=1 // loop_body
      %s21 = ssub.s32 %s16, 1
      %s22 = ssub.s32 %s16, 2
      %s29 = sadd.s32 1, %s24
      %p30 = scmp.ge.s32.totalorder %s29, 2
      %s31 = scalar_select %p30, 0, %s29
      %s32 = sadd.s32 1, %s23
      %s33 = scalar_select %p30, %s32, %s23
      %p34 = scmp.ge.s32.totalorder %s33, 1
      %s35 = scalar_select %p34, 0, %s33
      %s36 = ssub.s32 %s23, %s35
      %p37 = scmp.eq.s32.totalorder %s36, 0
      %s39 = sadd.s32 %s38, 1
      %s40 = scalar_select %p37, %s38, %s39
      %p43 = pneg %p37
      %p44 = scmp.eq.s32.totalorder %s16, 1
      %p45 = por %p43, %p44
      %p46 = scmp.ne.s32.totalorder %s38, %s41
      %p47 = scmp.eq.s32.totalorder %s16, 0
      %p48 = por %p46, %p47
      %p49 = scmp.ne.s32.totalorder %s38, %s41
      %p50 = scmp.eq.s32.totalorder %s21, 1
      %p51 = por %p49, %p50
      %p52 = scmp.ne.s32.totalorder %s41, %s42
      %p53 = scmp.eq.s32.totalorder %s21, 0
      %p54 = por %p52, %p53
      %p55 = scmp.ne.s32.totalorder %s41, %s42
      %p56 = scmp.eq.s32.totalorder %s22, 1
      %p57 = por %p55, %p56
      %p59 = scmp.ne.s32.totalorder %s42, %s58
      %p60 = scmp.eq.s32.totalorder %s22, 0
      %p61 = por %p59, %p60
      %s62 = ssub.s32 %s24, %s31
      %p63 = scmp.eq.s32.totalorder %s62, 0
      %s65 = sadd.s32 %s64, 1
      %s66 = scalar_select %p63, %s64, %s65
      %p69 = pneg %p63
      %p70 = scmp.eq.s32.totalorder %s16, 1
      %p71 = por %p69, %p70
      %p72 = scmp.ne.s32.totalorder %s64, %s67
      %p73 = scmp.eq.s32.totalorder %s16, 0
      %p74 = por %p72, %p73
      %p75 = scmp.ne.s32.totalorder %s64, %s67
      %p76 = scmp.eq.s32.totalorder %s21, 1
      %p77 = por %p75, %p76
      %p78 = scmp.ne.s32.totalorder %s67, %s68
      %p79 = scmp.eq.s32.totalorder %s21, 0
      %p80 = por %p78, %p79
      %p81 = scmp.ne.s32.totalorder %s67, %s68
      %p82 = scmp.eq.s32.totalorder %s22, 1
      %p83 = por %p81, %p82
      %p85 = scmp.ne.s32.totalorder %s68, %s84
      %p86 = scmp.eq.s32.totalorder %s22, 0
      %p87 = por %p85, %p86
      %s88 = ssub.s32 %s24, %s31
      %p89 = scmp.eq.s32.totalorder %s88, 0
      %s91 = sadd.s32 %s90, 1
      %s92 = scalar_select %p89, %s90, %s91
      %p95 = pneg %p89
      %p96 = scmp.eq.s32.totalorder %s16, 1
      %p97 = por %p95, %p96
      %p98 = scmp.ne.s32.totalorder %s90, %s93
      %p99 = scmp.eq.s32.totalorder %s16, 0
      %p100 = por %p98, %p99
      %p101 = scmp.ne.s32.totalorder %s90, %s93
      %p102 = scmp.eq.s32.totalorder %s21, 1
      %p103 = por %p101, %p102
      %p104 = scmp.ne.s32.totalorder %s93, %s94
      %p105 = scmp.eq.s32.totalorder %s21, 0
      %p106 = por %p104, %p105
      %p107 = scmp.ne.s32.totalorder %s93, %s94
      %p108 = scmp.eq.s32.totalorder %s22, 1
      %p109 = por %p107, %p108
      %p111 = scmp.ne.s32.totalorder %s94, %s110
      %p112 = scmp.eq.s32.totalorder %s22, 0
      %p113 = por %p111, %p112
      %s114 = ssub.s32 %s24, %s31
      %p115 = scmp.eq.s32.totalorder %s114, 0
      %s117 = sadd.s32 %s116, 1
      %s118 = scalar_select %p115, %s116, %s117
      %p121 = pneg %p115
      %p122 = scmp.eq.s32.totalorder %s16, 1
      %p123 = por %p121, %p122
      %p124 = scmp.ne.s32.totalorder %s116, %s119
      %p125 = scmp.eq.s32.totalorder %s16, 0
      %p126 = por %p124, %p125
      %p127 = scmp.ne.s32.totalorder %s116, %s119
      %p128 = scmp.eq.s32.totalorder %s21, 1
      %p129 = por %p127, %p128
      %p130 = scmp.ne.s32.totalorder %s119, %s120
      %p131 = scmp.eq.s32.totalorder %s21, 0
      %p132 = por %p130, %p131
      %p133 = scmp.ne.s32.totalorder %s119, %s120
      %p134 = scmp.eq.s32.totalorder %s22, 1
      %p135 = por %p133, %p134
      %p137 = scmp.ne.s32.totalorder %s120, %s136
      %p138 = scmp.eq.s32.totalorder %s22, 0
      %p139 = por %p137, %p138
      %s140 = ssub.s32 %s24, %s31
      %p141 = scmp.eq.s32.totalorder %s140, 0
      %s143 = sadd.s32 %s142, 1
      %s144 = scalar_select %p141, %s142, %s143
      %p147 = pneg %p141
      %p148 = scmp.eq.s32.totalorder %s16, 1
      %p149 = por %p147, %p148
      %p150 = scmp.ne.s32.totalorder %s142, %s145
      %p151 = scmp.eq.s32.totalorder %s16, 0
      %p152 = por %p150, %p151
      %p153 = scmp.ne.s32.totalorder %s142, %s145
      %p154 = scmp.eq.s32.totalorder %s21, 1
      %p155 = por %p153, %p154
      %p156 = scmp.ne.s32.totalorder %s145, %s146
      %p157 = scmp.eq.s32.totalorder %s21, 0
      %p158 = por %p156, %p157
      %p159 = scmp.ne.s32.totalorder %s145, %s146
      %p160 = scmp.eq.s32.totalorder %s22, 1
      %p161 = por %p159, %p160
      %p163 = scmp.ne.s32.totalorder %s146, %s162
      %p164 = scmp.eq.s32.totalorder %s22, 0
      %p165 = por %p163, %p164
      %s166 = ssub.s32 %s23, %s35
      %p167 = scmp.eq.s32.totalorder %s166, 0
      %s169 = sadd.s32 %s168, 1
      %s170 = scalar_select %p167, %s168, %s169
      %p173 = pneg %p167
      %p174 = scmp.eq.s32.totalorder %s16, 1
      %p175 = por %p173, %p174
      %p176 = scmp.ne.s32.totalorder %s168, %s171
      %p177 = scmp.eq.s32.totalorder %s16, 0
      %p178 = por %p176, %p177
      %p179 = scmp.ne.s32.totalorder %s168, %s171
      %p180 = scmp.eq.s32.totalorder %s21, 1
      %p181 = por %p179, %p180
      %p182 = scmp.ne.s32.totalorder %s171, %s172
      %p183 = scmp.eq.s32.totalorder %s21, 0
      %p184 = por %p182, %p183
      %p185 = scmp.ne.s32.totalorder %s171, %s172
      %p186 = scmp.eq.s32.totalorder %s22, 1
      %p187 = por %p185, %p186
      %p189 = scmp.ne.s32.totalorder %s172, %s188
      %p190 = scmp.eq.s32.totalorder %s22, 0
      %p191 = por %p189, %p190
      %p192 = scmp.le.s32.totalorder 1, %s16
      %p193 = scmp.lt.s32.totalorder %s16, 3
      %p194 = pnand %p192, %p193
      %p195 = pneg %p194
      // Predicated region
      $region9: #{tpu_custom_call.1} parent=5 // pred_check
        _
      $region10: #{tpu_custom_call.1} parent=5 // pred_check_branch
        %197 = sbr.rel (%p194) target = $region12
      $region11: #{tpu_custom_call.1} parent=5 // pred_region
        %s198 = ssub.s32 %s16, 1
        // Predicated region
        $region13: #{tpu_custom_call.1} parent=11 // pred_check
          %p199 = pneg %p54
        $region14: #{tpu_custom_call.1} parent=11 // pred_check_branch
          %201 = sbr.rel (%p199) target = $region16
        $region15: #{tpu_custom_call.1} parent=11 // pred_region
          %s202 = smul.u32 2, %s25
          %s204 = ssub.s32 128, 128
          %205 = vsyncadd [#allocation4], %s204
          %s206 = smul.addr %s202, 64
          %s207 = scalar_lea.hbm %s0, %s206
          %s208 = sshll.u32 [#allocation3], 4
          %s209 = int_to_ptr.vmem [resolvable:$true] %s208
          %214 = dma.hbm_to_vmem [thread:$0]  %s207, 128, %s209, [#allocation4], 64, 64, 4
        $region16: #{tpu_custom_call.1} parent=11 // pred_fallthru
          _
      $region12: #{tpu_custom_call.1} parent=5 // pred_fallthru
        _
      %p215 = scmp.lt.s32.totalorder %s16, 2
      // Predicated region
      $region17: #{tpu_custom_call.1} parent=5 // pred_check
        %p216 = pneg %p215
      $region18: #{tpu_custom_call.1} parent=5 // pred_check_branch
        %218 = sbr.rel (%p216) target = $region20
      $region19: #{tpu_custom_call.1} parent=5 // pred_region
        // Predicated region
        $region21: #{tpu_custom_call.1} parent=19 // pred_check
          %p219 = pneg %p74
        $region22: #{tpu_custom_call.1} parent=19 // pred_check_branch
          %221 = sbr.rel (%p219) target = $region24
        $region23: #{tpu_custom_call.1} parent=19 // pred_region
          %s222 = sand.u32 %s16, 1
          %s223 = scalar_lea.sflag [#allocation7], %s222
          %s224 = sand.u32 %s64, 1
          %s225 = smul.addr %s224, 64
          %s226 = scalar_lea.vmem [#allocation6], %s225
          %s228 = ssub.s32 1024, 1024
          %229 = vsyncadd %s223, %s228
          %s230 = smul.addr %s24, 16
          %s231 = smul.addr %s230, 64
          %s232 = scalar_lea.hbm %s1, %s231
          %s233 = sshll.u32 %s226, 4
          %s234 = int_to_ptr.vmem [resolvable:$true] %s233
          %239 = dma.hbm_to_vmem [thread:$0]  %s232, 1024, %s234, %s223, 64, 64, 4
        $region24: #{tpu_custom_call.1} parent=19 // pred_fallthru
          _
        // Predicated region
        $region25: #{tpu_custom_call.1} parent=19 // pred_check
          %p240 = pneg %p100
        $region26: #{tpu_custom_call.1} parent=19 // pred_check_branch
          %242 = sbr.rel (%p240) target = $region28
        $region27: #{tpu_custom_call.1} parent=19 // pred_region
          %p243 = scmp.lt.s32.totalorder %s24, 1
          %s244 = scalar_select %p243, %s24, 1
          %s245 = scalar_lea.vmem %s2, %s244
        $region28: #{tpu_custom_call.1} parent=19 // pred_fallthru
          _
        // Predicated region
        $region29: #{tpu_custom_call.1} parent=19 // pred_check
          %p246 = pneg %p126
        $region30: #{tpu_custom_call.1} parent=19 // pred_check_branch
          %248 = sbr.rel (%p246) target = $region32
        $region31: #{tpu_custom_call.1} parent=19 // pred_region
          %s249 = sand.u32 %s16, 1
          %s250 = scalar_lea.sflag [#allocation7], %s249
          %s251 = sand.u32 %s116, 1
          %s252 = smul.addr %s251, 64
          %s253 = scalar_lea.vmem [#allocation8], %s252
          %s255 = ssub.s32 1024, 1024
          %256 = vsyncadd %s250, %s255
          %s257 = smul.addr %s24, 16
          %s258 = smul.addr %s257, 64
          %s259 = scalar_lea.hbm %s3, %s258
          %s260 = sshll.u32 %s253, 4
          %s261 = int_to_ptr.vmem [resolvable:$true] %s260
          %266 = dma.hbm_to_vmem [thread:$0]  %s259, 1024, %s261, %s250, 64, 64, 4
        $region32: #{tpu_custom_call.1} parent=19 // pred_fallthru
          _
        // Predicated region
        $region33: #{tpu_custom_call.1} parent=19 // pred_check
          %p267 = pneg %p152
        $region34: #{tpu_custom_call.1} parent=19 // pred_check_branch
          %269 = sbr.rel (%p267) target = $region36
        $region35: #{tpu_custom_call.1} parent=19 // pred_region
          %p270 = scmp.lt.s32.totalorder %s24, 1
          %s271 = scalar_select %p270, %s24, 1
          %s272 = scalar_lea.vmem %s4, %s271
        $region36: #{tpu_custom_call.1} parent=19 // pred_fallthru
          _
      $region20: #{tpu_custom_call.1} parent=5 // pred_fallthru
        _
      %p273 = scmp.le.s32.totalorder 1, %s16
      %p274 = scmp.lt.s32.totalorder %s16, 3
      %p275 = pnand %p273, %p274
      %p276 = pneg %p275
      // Predicated region
      $region37: #{tpu_custom_call.1} parent=5 // pred_check
        _
      $region38: #{tpu_custom_call.1} parent=5 // pred_check_branch
        %278 = sbr.rel (%p275) target = $region40
      $region39: #{tpu_custom_call.1} parent=5 // pred_region
        %s279 = ssub.s32 %s16, 1
        // Predicated region
        $region41: #{tpu_custom_call.1} parent=39 // pred_check
          %p280 = pneg %p54
        $region42: #{tpu_custom_call.1} parent=39 // pred_check_branch
          %282 = sbr.rel (%p280) target = $region44
        $region43: #{tpu_custom_call.1} parent=39 // pred_region
          %283 = dma.done [#allocation4], 128
        $region44: #{tpu_custom_call.1} parent=39 // pred_fallthru
          _
        %s284 = sand.u32 %s21, 1
        %s285 = scalar_lea.sflag [#allocation7], %s284
        %s286 = sand.u32 %s67, 1
        %s287 = smul.addr %s286, 64
        %s288 = scalar_lea.vmem [#allocation6], %s287
        // Predicated region
        $region45: #{tpu_custom_call.1} parent=39 // pred_check
          %p289 = pneg %p80
        $region46: #{tpu_custom_call.1} parent=39 // pred_check_branch
          %291 = sbr.rel (%p289) target = $region48
        $region47: #{tpu_custom_call.1} parent=39 // pred_region
          %292 = dma.done %s285, 1024
        $region48: #{tpu_custom_call.1} parent=39 // pred_fallthru
          _
        %s293 = sand.u32 %s21, 1
        %s294 = scalar_lea.sflag [#allocation7], %s293
        %s295 = sand.u32 %s119, 1
        %s296 = smul.addr %s295, 64
        %s297 = scalar_lea.vmem [#allocation8], %s296
        // Predicated region
        $region49: #{tpu_custom_call.1} parent=39 // pred_check
          %p298 = pneg %p132
        $region50: #{tpu_custom_call.1} parent=39 // pred_check_branch
          %300 = sbr.rel (%p298) target = $region52
        $region51: #{tpu_custom_call.1} parent=39 // pred_region
          %301 = dma.done %s294, 1024
        $region52: #{tpu_custom_call.1} parent=39 // pred_fallthru
          _
        %p302 = pneg %p54
        %p303 = pneg %p51
        %s304 = sand.u32 %s21, 1
        %s305 = scalar_lea.sflag [#allocation7], %s304
        %s306 = sand.u32 %s67, 1
        %s307 = smul.addr %s306, 64
        %s308 = scalar_lea.vmem [#allocation6], %s307
        %p309 = pneg %p80
        %p310 = pneg %p77
        %p311 = scmp.lt.s32.totalorder %s26, 1
        %s312 = scalar_select %p311, %s26, 1
        %s313 = scalar_lea.vmem %s2, %s312
        %p314 = pneg %p106
        %p315 = pneg %p103
        %s316 = sand.u32 %s21, 1
        %s317 = scalar_lea.sflag [#allocation7], %s316
        %s318 = sand.u32 %s119, 1
        %s319 = smul.addr %s318, 64
        %s320 = scalar_lea.vmem [#allocation8], %s319
        %p321 = pneg %p132
        %p322 = pneg %p129
        %p323 = scmp.lt.s32.totalorder %s26, 1
        %s324 = scalar_select %p323, %s26, 1
        %s325 = scalar_lea.vmem %s4, %s324
        %p326 = pneg %p158
        %p327 = pneg %p155
        %p328 = pneg %p184
        %p329 = pneg %p181
        %s330 = smul.u32 2, %s25
        %p331 = scmp.lt.s32.totalorder %s26, 1
        %s332 = scalar_select %p331, %s26, 1
        %s333 = scalar_lea.vmem %s2, %s332
        %p334 = scmp.lt.s32.totalorder %s26, 1
        %s335 = scalar_select %p334, %s26, 1
        %s336 = scalar_lea.vmem %s4, %s335
        %s337 = smul.u32 2, %s25
        %p339 = scmp.eq.s32.totalorder %s26, 0
        // Predicated region
        $region53: #{tpu_custom_call.1} parent=39 // pred_check
          %p340 = pneg %p339
        $region54: #{tpu_custom_call.1} parent=39 // pred_check_branch
          %342 = sbr.rel (%p340) target = $region56
        $region55: #{tpu_custom_call.1} parent=39 // pred_region
          %v343 = vld [vmem:[#allocation3] sm:$0xf]
          %v344 = vld [vmem:[#allocation3 + $0x4] sm:$0xf]
          %v345 = vunpack.c.l.bf16 %v343
          %v346 = vunpack.c.l.bf16 %v344
          %347 = vst [vmem:[#allocation2] sm:$0xff] %v345
          %348 = vst [vmem:[#allocation2 + $0x8] sm:$0xff] %v346
        $region56: #{tpu_custom_call.1} parent=39 // pred_fallthru
          _
        %v349 = vld [vmem:[#allocation2] sm:$0xff]
        %v350 = vld [vmem:[#allocation2 + $0x8] sm:$0xff]
        %v351 = vpack.c.bf16 %v350, %v349
        %v352 = vld [vmem:[%s288] sm:$0xf]
        %v353 = vld [vmem:[%s288 + $0x4] sm:$0xf]
        %v354 = vld [vmem:[%s288 + $0x8] sm:$0xf]
        %v355 = vld [vmem:[%s288 + $0xc] sm:$0xf]
        %v356 = vld [vmem:[%s288 + $0x10] sm:$0xf]
        %v357 = vld [vmem:[%s288 + $0x14] sm:$0xf]
        %v358 = vld [vmem:[%s288 + $0x18] sm:$0xf]
        %v359 = vld [vmem:[%s288 + $0x1c] sm:$0xf]
        %v360 = vld [vmem:[%s288 + $0x20] sm:$0xf]
        %v361 = vld [vmem:[%s288 + $0x24] sm:$0xf]
        %v362 = vld [vmem:[%s288 + $0x28] sm:$0xf]
        %v363 = vld [vmem:[%s288 + $0x2c] sm:$0xf]
        %v364 = vld [vmem:[%s288 + $0x30] sm:$0xf]
        %v365 = vld [vmem:[%s288 + $0x34] sm:$0xf]
        %v366 = vld [vmem:[%s288 + $0x38] sm:$0xf]
        %v367 = vld [vmem:[%s288 + $0x3c] sm:$0xf]
        %v368 = vld [vmem:[%s333] sm:$0x1]
        %v370 = vlaneseq
        %v371 = vshrl.u32 %v370, 7
        %v372 = vsub.s32 0, %v371
        %v373 = vrot.slane %v368, %v372
        %v391 = vunpack.c.l.b16 %v352
        %v392 = vunpack.c.l.b16 %v353
        %v393 = vunpack.c.l.b16 %v354
        %v394 = vunpack.c.l.b16 %v355
        %v395 = vunpack.c.l.b16 %v356
        %v396 = vunpack.c.l.b16 %v357
        %v397 = vunpack.c.l.b16 %v358
        %v398 = vunpack.c.l.b16 %v359
        %v399 = vunpack.c.l.b16 %v360
        %v400 = vunpack.c.l.b16 %v361
        %v401 = vunpack.c.l.b16 %v362
        %v402 = vunpack.c.l.b16 %v363
        %v403 = vunpack.c.l.b16 %v364
        %v404 = vunpack.c.l.b16 %v365
        %v405 = vunpack.c.l.b16 %v366
        %v406 = vunpack.c.l.b16 %v367
        %v407 = vpack.c.b16 %v392, %v391
        %v408 = vpack.c.b16 %v394, %v393
        %v409 = vpack.c.b16 %v396, %v395
        %v410 = vpack.c.b16 %v398, %v397
        %v411 = vpack.c.b16 %v400, %v399
        %v412 = vpack.c.b16 %v402, %v401
        %v413 = vpack.c.b16 %v404, %v403
        %v414 = vpack.c.b16 %v406, %v405
        %423 = vmatprep.subr.bf16.mxu0 0
        %424 = vmatpush1.bf16.msra.mxu0 %v414
        %425 = vmatprep.subr.bf16.mxu0 0
        %426 = vmatpush1.bf16.msra.mxu0 %v413
        %427 = vmatprep.subr.bf16.mxu0 0
        %428 = vmatpush1.bf16.msra.mxu0 %v412
        %429 = vmatprep.subr.bf16.mxu0 0
        %430 = vmatpush1.bf16.msra.mxu0 %v411
        %431 = vmatprep.subr.bf16.mxu0 0
        %432 = vmatpush1.bf16.msra.mxu0 %v410
        %433 = vmatprep.subr.bf16.mxu0 0
        %434 = vmatpush1.bf16.msra.mxu0 %v409
        %435 = vmatprep.subr.bf16.mxu0 0
        %436 = vmatpush1.bf16.msra.mxu0 %v408
        %437 = vmatprep.subr.bf16.mxu0 0
        %438 = vmatpush1.bf16.msra.mxu0 %v407
        %439 = vmatprep.subr.bf16.mxu0 0
        %440 = vmatpush2.bf16.msra.mxu0 0
        %441 = vmatprep.subr.bf16.mxu0 0
        %442 = vmatpush2.bf16.msra.mxu0 0
        %443 = vmatprep.subr.bf16.mxu0 0
        %444 = vmatpush2.bf16.msra.mxu0 0
        %445 = vmatprep.subr.bf16.mxu0 0
        %446 = vmatpush2.bf16.msra.mxu0 0
        %447 = vmatprep.subr.bf16.mxu0 0
        %448 = vmatpush2.bf16.msra.mxu0 0
        %449 = vmatprep.subr.bf16.mxu0 0
        %450 = vmatpush2.bf16.msra.mxu0 0
        %451 = vmatprep.subr.bf16.mxu0 0
        %452 = vmatpush2.bf16.msra.mxu0 0
        %453 = vmatprep.subr.bf16.mxu0 0
        %454 = vmatpush2.bf16.msra.mxu0 0
        %455 = vmatprep.mubr.bf16.mxu0 0
        %456 = vmatmul.mubr.bf16.gmra.mxu0 %v351
        %v457 = vpop.f32.mrf.mxu0
        %v458 = vadd.f32 %v373, %v457
        %v459 = vpop.f32.mrf.mxu0
        %v460 = vpop.f32.mrf.mxu0
        %v461 = vadd.f32 %v373, %v460
        %v462 = vpop.f32.mrf.mxu0
        %463 = vdwg.mxu0
        %v464 = vmax.f32 %v458, 0.0
        %v465 = vmax.f32 %v461, 0.0
        %v466 = vpack.c.bf16 %v465, %v464
        %v467 = vld [vmem:[%s297] sm:$0xf]
        %v468 = vld [vmem:[%s297 + $0x4] sm:$0xf]
        %v469 = vld [vmem:[%s297 + $0x8] sm:$0xf]
        %v470 = vld [vmem:[%s297 + $0xc] sm:$0xf]
        %v471 = vld [vmem:[%s297 + $0x10] sm:$0xf]
        %v472 = vld [vmem:[%s297 + $0x14] sm:$0xf]
        %v473 = vld [vmem:[%s297 + $0x18] sm:$0xf]
        %v474 = vld [vmem:[%s297 + $0x1c] sm:$0xf]
        %v475 = vld [vmem:[%s297 + $0x20] sm:$0xf]
        %v476 = vld [vmem:[%s297 + $0x24] sm:$0xf]
        %v477 = vld [vmem:[%s297 + $0x28] sm:$0xf]
        %v478 = vld [vmem:[%s297 + $0x2c] sm:$0xf]
        %v479 = vld [vmem:[%s297 + $0x30] sm:$0xf]
        %v480 = vld [vmem:[%s297 + $0x34] sm:$0xf]
        %v481 = vld [vmem:[%s297 + $0x38] sm:$0xf]
        %v482 = vld [vmem:[%s297 + $0x3c] sm:$0xf]
        %v483 = vld [vmem:[%s336] sm:$0x1]
        %v485 = vlaneseq
        %v486 = vshrl.u32 %v485, 7
        %v487 = vsub.s32 0, %v486
        %v488 = vrot.slane %v483, %v487
        %v506 = vunpack.c.l.b16 %v467
        %v507 = vunpack.c.l.b16 %v468
        %v508 = vunpack.c.l.b16 %v469
        %v509 = vunpack.c.l.b16 %v470
        %v510 = vunpack.c.l.b16 %v471
        %v511 = vunpack.c.l.b16 %v472
        %v512 = vunpack.c.l.b16 %v473
        %v513 = vunpack.c.l.b16 %v474
        %v514 = vunpack.c.l.b16 %v475
        %v515 = vunpack.c.l.b16 %v476
        %v516 = vunpack.c.l.b16 %v477
        %v517 = vunpack.c.l.b16 %v478
        %v518 = vunpack.c.l.b16 %v479
        %v519 = vunpack.c.l.b16 %v480
        %v520 = vunpack.c.l.b16 %v481
        %v521 = vunpack.c.l.b16 %v482
        %v522 = vpack.c.b16 %v507, %v506
        %v523 = vpack.c.b16 %v509, %v508
        %v524 = vpack.c.b16 %v511, %v510
        %v525 = vpack.c.b16 %v513, %v512
        %v526 = vpack.c.b16 %v515, %v514
        %v527 = vpack.c.b16 %v517, %v516
        %v528 = vpack.c.b16 %v519, %v518
        %v529 = vpack.c.b16 %v521, %v520
        %538 = vmatprep.subr.bf16.mxu0 0
        %539 = vmatpush1.bf16.msra.mxu0 %v529
        %540 = vmatprep.subr.bf16.mxu0 0
        %541 = vmatpush1.bf16.msra.mxu0 %v528
        %542 = vmatprep.subr.bf16.mxu0 0
        %543 = vmatpush1.bf16.msra.mxu0 %v527
        %544 = vmatprep.subr.bf16.mxu0 0
        %545 = vmatpush1.bf16.msra.mxu0 %v526
        %546 = vmatprep.subr.bf16.mxu0 0
        %547 = vmatpush1.bf16.msra.mxu0 %v525
        %548 = vmatprep.subr.bf16.mxu0 0
        %549 = vmatpush1.bf16.msra.mxu0 %v524
        %550 = vmatprep.subr.bf16.mxu0 0
        %551 = vmatpush1.bf16.msra.mxu0 %v523
        %552 = vmatprep.subr.bf16.mxu0 0
        %553 = vmatpush1.bf16.msra.mxu0 %v522
        %554 = vmatprep.subr.bf16.mxu0 0
        %555 = vmatpush2.bf16.msra.mxu0 0
        %556 = vmatprep.subr.bf16.mxu0 0
        %557 = vmatpush2.bf16.msra.mxu0 0
        %558 = vmatprep.subr.bf16.mxu0 0
        %559 = vmatpush2.bf16.msra.mxu0 0
        %560 = vmatprep.subr.bf16.mxu0 0
        %561 = vmatpush2.bf16.msra.mxu0 0
        %562 = vmatprep.subr.bf16.mxu0 0
        %563 = vmatpush2.bf16.msra.mxu0 0
        %564 = vmatprep.subr.bf16.mxu0 0
        %565 = vmatpush2.bf16.msra.mxu0 0
        %566 = vmatprep.subr.bf16.mxu0 0
        %567 = vmatpush2.bf16.msra.mxu0 0
        %568 = vmatprep.subr.bf16.mxu0 0
        %569 = vmatpush2.bf16.msra.mxu0 0
        %570 = vmatprep.mubr.bf16.mxu0 0
        %571 = vmatmul.mubr.bf16.gmra.mxu0 %v466
        %v572 = vpop.f32.mrf.mxu0
        %v573 = vadd.f32 %v488, %v572
        %v574 = vpop.f32.mrf.mxu0
        %v575 = vpop.f32.mrf.mxu0
        %v576 = vadd.f32 %v488, %v575
        %v577 = vpop.f32.mrf.mxu0
        %578 = vdwg.mxu0
        %579 = vst [vmem:[#allocation2] sm:$0xff] %v573
        %580 = vst [vmem:[#allocation2 + $0x8] sm:$0xff] %v576
        %p581 = scmp.eq.s32.totalorder %s26, 1
        // Predicated region
        $region57: #{tpu_custom_call.1} parent=39 // pred_check
          %p582 = pneg %p581
        $region58: #{tpu_custom_call.1} parent=39 // pred_check_branch
          %584 = sbr.rel (%p582) target = $region60
        $region59: #{tpu_custom_call.1} parent=39 // pred_region
          %v585 = vld [vmem:[#allocation2] sm:$0xff]
          %v586 = vld [vmem:[#allocation2 + $0x8] sm:$0xff]
          %v587 = vpack.c.bf16 %v586, %v585
          %v589 = vunpack.c.l.b16 %v587
          %v590 = vunpack.c.h.b16 %v587
          %v591 = vpack.c.b16 %v589, %v589
          %v592 = vpack.c.b16 %v590, %v590
          %595 = vst [vmem:[#allocation9] sm:$0xf] %v591
          %596 = vst [vmem:[#allocation9 + $0x4] sm:$0xf] %v592
        $region60: #{tpu_custom_call.1} parent=39 // pred_fallthru
          _
        // Predicated region
        $region61: #{tpu_custom_call.1} parent=39 // pred_check
          %p597 = pneg %p181
        $region62: #{tpu_custom_call.1} parent=39 // pred_check_branch
          %599 = sbr.rel (%p597) target = $region64
        $region63: #{tpu_custom_call.1} parent=39 // pred_region
          %s600 = smul.u32 2, %s25
          %s602 = ssub.s32 128, 128
          %603 = vsyncadd [#allocation5], %s602
          %s604 = smul.addr %s600, 64
          %s605 = scalar_lea.hbm %s5, %s604
          %s606 = sshll.u32 [#allocation9], 4
          %s607 = int_to_ptr.vmem [resolvable:$true] %s606
          %612 = dma.vmem_to_hbm [thread:$0]  %s607, 128, %s605, [#allocation5], 64, 64, 4
        $region64: #{tpu_custom_call.1} parent=39 // pred_fallthru
          _
        // Predicated region
        $region65: #{tpu_custom_call.1} parent=39 // pred_check
          %p613 = pneg %p181
        $region66: #{tpu_custom_call.1} parent=39 // pred_check_branch
          %615 = sbr.rel (%p613) target = $region68
        $region67: #{tpu_custom_call.1} parent=39 // pred_region
          %616 = dma.done [#allocation5], 128
        $region68: #{tpu_custom_call.1} parent=39 // pred_fallthru
          _
      $region40: #{tpu_custom_call.1} parent=5 // pred_fallthru
        _
      %p617 = scmp.le.s32.totalorder 2, %s16
      // Predicated region
      $region69: #{tpu_custom_call.1} parent=5 // pred_check
        %p618 = pneg %p617
      $region70: #{tpu_custom_call.1} parent=5 // pred_check_branch
        %620 = sbr.rel (%p618) target = $region72
      $region71: #{tpu_custom_call.1} parent=5 // pred_region
        %s621 = ssub.s32 %s16, 2
      $region72: #{tpu_custom_call.1} parent=5 // pred_fallthru
        _
    $region6: #{tpu_custom_call.1} parent=1 // loop_footer
      %s20 = sadd.s32 1, %s16
    $region7: #{tpu_custom_call.1} parent=1 // loop_footer_branch
      %15 = sbr.rel target = $region3
    $region8: #{tpu_custom_call.1} parent=1 // loop_exit
      _
    %622 = vsyncpa [#allocation4], 1
    %s623 = scalar_lea.sflag [#allocation4], 1
    %624 = vsyncpa %s623, 1
    %625 = vsyncpa [#allocation7], 1
    %s626 = scalar_lea.sflag [#allocation7], 1
    %627 = vsyncpa %s626, 1
    %628 = vsyncpa [#allocation5], 1
    %s629 = scalar_lea.sflag [#allocation5], 1
    %630 = vsyncpa %s629, 1

</llo_original>
